<compile_context>
chip_gen: v6e
topology: v6e:2x2x1
jax: 0.10.0
libtpu: 0.0.40
codegen_flags: <defaults>
</compile_context>

<pallas_src>
import functools

import jax
import jax.numpy as jnp
from jax.experimental import pallas as pl
from jax.experimental.pallas import tpu as pltpu


def _round_up(x, m):
    return -(-x // m) * m


def _choose_tiles(B, P, F, s, itemsize, *, target_block_bytes=2 << 20,
                  min_grid_steps=8):
    """Pick (tb, tp) batch/pixel tile sizes giving ~target-sized DMA blocks."""
    sub = 8 * max(1, 4 // itemsize)           # sublane granularity: 8/16/32
    f_pad = _round_up(F, 128)                 # lane dim pads to 128 in VMEM
    per_pixel = (1 + s) * f_pad * itemsize    # padded in+out bytes per (b, p)

    tp = max(sub, (target_block_bytes // per_pixel) // sub * sub)
    tb = 1
    if tp >= P:                               # whole pixel axis fits: fold batch
        tp = P
        tb = max(1, min(B, target_block_bytes // max(1, P * per_pixel)))

    def n_steps(tb_, tp_):
        return pl.cdiv(B, tb_) * pl.cdiv(P, tp_)

    # Keep enough grid steps for the software pipeline / both v7x TensorCores.
    while n_steps(tb, tp) < min_grid_steps:
        if tb > 1:
            tb = max(1, tb // 2)
        elif tp > sub:
            tp = max(sub, (tp // 2) // sub * sub)
        else:
            break
    return tb, tp, sub, f_pad


def _vmem_limit_bytes(tb, tp, s, f_pad, itemsize, sub):
    """Explicit scoped-VMEM limit: double-buffered in+out blocks + headroom."""
    in_b = tb * _round_up(tp, sub) * f_pad * itemsize
    out_b = tb * _round_up(tp * s, sub) * f_pad * itemsize
    limit = 2 * (in_b + out_b) + (4 << 20)
    return int(min(max(limit, 8 << 20), 32 << 20))


# -----------------------------------------------------------------------------
# Primary kernel: emit the final (B, P*s, F) layout directly (single HBM pass).
# -----------------------------------------------------------------------------
def _nn_upsample_direct_kernel(x_ref, o_ref, *, s):
    # x_ref: (tb, tp, F) input tile;  o_ref: (tb, tp*s, F) output tile.
    x = x_ref[...]
    tb, tp, f = x.shape
    # Repeat every pixel row s times (nearest neighbor): sublane broadcast
    # followed by an in-VMEM merge of the (tp, s) axes.  The relayout cost
    # hides under the s-times-larger output DMA of this HBM-bound kernel.
    y = jnp.broadcast_to(x[:, :, None, :], (tb, tp, s, f))
    o_ref[...] = y.reshape(tb, tp * s, f)


def _upsample_direct(x, s, tb, tp, vmem_limit):
    B, P, F = x.shape
    grid = (pl.cdiv(B, tb), pl.cdiv(P, tp))
    return pl.pallas_call(
        functools.partial(_nn_upsample_direct_kernel, s=s),
        out_shape=jax.ShapeDtypeStruct((B, P * s, F), x.dtype),
        grid=grid,
        in_specs=[pl.BlockSpec((tb, tp, F), lambda b, p: (b, p, 0))],
        out_specs=pl.BlockSpec((tb, tp * s, F), lambda b, p: (b, p, 0)),
        compiler_params=pltpu.CompilerParams(
            dimension_semantics=("parallel", "parallel"),
            vmem_limit_bytes=vmem_limit),
        cost_estimate=pl.CostEstimate(
            flops=0, transcendentals=0,
            bytes_accessed=B * P * F * (1 + s) * jnp.dtype(x.dtype).itemsize),
    )(x)


# -----------------------------------------------------------------------------
# Fallback kernel (known-good): lane-dense (B, P, s*F) + external reshape.
# -----------------------------------------------------------------------------
def _nn_upsample_lanedense_kernel(x_ref, o_ref, *, s):
    # x_ref: (tb, tp, F);  o_ref: (tb, tp, s*F) lane-dense output tile.
    x = x_ref[...]
    f = x.shape[-1]
    # s static slice stores instead of one materialized concatenate: lower
    # vreg pressure, store-from-source per slice.
    for k in range(s):
        o_ref[:, :, k * f:(k + 1) * f] = x


def _upsample_lane_dense(x, s, tb, tp, vmem_limit):
    B, P, F = x.shape
    grid = (pl.cdiv(B, tb), pl.cdiv(P, tp))
    out3 = pl.pallas_call(
        functools.partial(_nn_upsample_lanedense_kernel, s=s),
        out_shape=jax.ShapeDtypeStruct((B, P, s * F), x.dtype),
        grid=grid,
        in_specs=[pl.BlockSpec((tb, tp, F), lambda b, p: (b, p, 0))],
        out_specs=pl.BlockSpec((tb, tp, s * F), lambda b, p: (b, p, 0)),
        compiler_params=pltpu.CompilerParams(
            dimension_semantics=("parallel", "parallel"),
            vmem_limit_bytes=vmem_limit),
        cost_estimate=pl.CostEstimate(
            flops=0, transcendentals=0,
            bytes_accessed=B * P * F * (1 + s) * jnp.dtype(x.dtype).itemsize),
    )(x)
    # NOTE: when F % 128 != 0 this reshape is a relayout (extra HBM pass over
    # the s-times-sized output); that is exactly why this path is a fallback.
    return out3.reshape(B, P * s, F)


def healpix_nn_upsample(x, scale_factor, mode="nearest"):
    """x: [B, P, F] -> [B, P*scale_factor, F] nearest-neighbor pixel upsample."""
    if mode != "nearest":
        raise NotImplementedError(
            "Only mode='nearest' is implemented as a Pallas kernel.")
    B, P, F = x.shape
    s = int(scale_factor)
    if s == 1:
        return x

    itemsize = jnp.dtype(x.dtype).itemsize
    tb, tp, sub, f_pad = _choose_tiles(B, P, F, s, itemsize)
    vmem_limit = _vmem_limit_bytes(tb, tp, s, f_pad, itemsize, sub)

    # Prefer the single-pass kernel that writes the final layout directly.
    # If this Mosaic version cannot lower the in-kernel sublane repeat, fall
    # back to the lane-dense kernel + reshape.  (Selection happens at eager
    # compile time; under an enclosing jit, pre-select the path instead.)
    try:
        return _upsample_direct(x, s, tb, tp, vmem_limit)
    except Exception:  # Mosaic lowering NotImplemented / LoweringException etc.
        return _upsample_lane_dense(x, s, tb, tp, vmem_limit)


if __name__ == "__main__":
    key = jax.random.PRNGKey(0)
    k0, k1 = jax.random.split(key)

    B, P, F = 2, 16, 32          # batch x pixels x features
    scale_factor = 4
    x = jax.random.normal(k0, (B, P, F), dtype=jnp.float32)

    out = healpix_nn_upsample(x, scale_factor)
    out = jax.block_until_ready(out)

    ref = jnp.repeat(x, scale_factor, axis=1)   # pure-JAX reference
    assert out.shape == (B, P * scale_factor, F), out.shape
    assert jnp.array_equal(out, ref), "mismatch vs. reference"

    # A second, multi-tile configuration (exercises tiling / partial coverage).
    B2, P2, F2 = 3, 96, 32
    x2 = jax.random.normal(k1, (B2, P2, F2), dtype=jnp.float32)
    out2 = jax.block_until_ready(healpix_nn_upsample(x2, scale_factor))
    assert out2.shape == (B2, P2 * scale_factor, F2), out2.shape
    assert jnp.array_equal(out2, jnp.repeat(x2, scale_factor, axis=1))

    print("KERNEL_OK")
</pallas_src>

<mosaic_0001>
module attributes {stable_mosaic.version = 11 : i64} {
  func.func @_nn_upsample_direct_kernel(%arg0: i32, %arg1: i32, %arg2: memref<1x8x32xf32, #tpu.memory_space<vmem>>, %arg3: memref<1x32x32xf32, #tpu.memory_space<vmem>>) attributes {dimension_semantics = [#tpu.dimension_semantics<parallel>, #tpu.dimension_semantics<parallel>], iteration_bounds = array<i64: 2, 2>, scalar_prefetch = 0 : i64, scratch_operands = 0 : i64, tpu.core_type = #tpu.core_type<tc>, window_params = [{transform_indices = @transform_0, window_bounds = array<i64: 1, 8, 32>}, {transform_indices = @transform_1, window_bounds = array<i64: 1, 32, 32>}]} {
    %c0 = arith.constant 0 : index
    %c0_0 = arith.constant 0 : index
    %c0_1 = arith.constant 0 : index
    %0 = vector.load %arg2[%c0, %c0_0, %c0_1] : memref<1x8x32xf32, #tpu.memory_space<vmem>>, vector<1x8x32xf32>
    %1 = vector.shape_cast %0 : vector<1x8x32xf32> to vector<1x8x1x32xf32>
    %2 = vector.shape_cast %1 : vector<1x8x1x32xf32> to vector<1x8x1x32xf32>
    %3 = vector.broadcast %2 : vector<1x8x1x32xf32> to vector<1x8x4x32xf32>
    %4 = vector.shape_cast %3 : vector<1x8x4x32xf32> to vector<1x32x32xf32>
    %c0_2 = arith.constant 0 : index
    %c0_3 = arith.constant 0 : index
    %c0_4 = arith.constant 0 : index
    %5 = vector.load %arg3[%c0_2, %c0_3, %c0_4] : memref<1x32x32xf32, #tpu.memory_space<vmem>>, vector<1x32x32xf32>
    tpu.vector_store %arg3[%c0_2, %c0_3, %c0_4], %4 {strides = array<i32>} : memref<1x32x32xf32, #tpu.memory_space<vmem>>, vector<1x32x32xf32>,
    return
  }
  func.func @transform_0(%arg0: i32, %arg1: i32) -> (i32, i32, i32) {
    %c0_i32 = arith.constant 0 : i32
    %c0_i32_0 = arith.constant 0 : i32
    return %arg0, %arg1, %c0_i32 : i32, i32, i32
  }
  func.func @transform_1(%arg0: i32, %arg1: i32) -> (i32, i32, i32) {
    %c0_i32 = arith.constant 0 : i32
    %c0_i32_0 = arith.constant 0 : i32
    return %arg0, %arg1, %c0_i32 : i32, i32, i32
  }
}

module attributes {stable_mosaic.version = 11 : i64} {
  func.func @_nn_upsample_lanedense_kernel(%arg0: i32, %arg1: i32, %arg2: memref<1x8x32xf32, #tpu.memory_space<vmem>>, %arg3: memref<1x8x128xf32, #tpu.memory_space<vmem>>) attributes {dimension_semantics = [#tpu.dimension_semantics<parallel>, #tpu.dimension_semantics<parallel>], iteration_bounds = array<i64: 2, 2>, scalar_prefetch = 0 : i64, scratch_operands = 0 : i64, tpu.core_type = #tpu.core_type<tc>, window_params = [{transform_indices = @transform_0, window_bounds = array<i64: 1, 8, 32>}, {transform_indices = @transform_1, window_bounds = array<i64: 1, 8, 128>}]} {
    %c0 = arith.constant 0 : index
    %c0_0 = arith.constant 0 : index
    %c0_1 = arith.constant 0 : index
    %0 = vector.load %arg2[%c0, %c0_0, %c0_1] : memref<1x8x32xf32, #tpu.memory_space<vmem>>, vector<1x8x32xf32>
    %c0_2 = arith.constant 0 : index
    %c0_3 = arith.constant 0 : index
    %c0_4 = arith.constant 0 : index
    %1 = vector.load %arg3[%c0_2, %c0_3, %c0_4] : memref<1x8x128xf32, #tpu.memory_space<vmem>>, vector<1x8x32xf32>
    tpu.vector_store %arg3[%c0_2, %c0_3, %c0_4], %0 {strides = array<i32>} : memref<1x8x128xf32, #tpu.memory_space<vmem>>, vector<1x8x32xf32>,
    %c0_5 = arith.constant 0 : index
    %c0_6 = arith.constant 0 : index
    %c32 = arith.constant 32 : index
    %2 = vector.load %arg3[%c0_5, %c0_6, %c32] : memref<1x8x128xf32, #tpu.memory_space<vmem>>, vector<1x8x32xf32>
    tpu.vector_store %arg3[%c0_5, %c0_6, %c32], %0 {strides = array<i32>} : memref<1x8x128xf32, #tpu.memory_space<vmem>>, vector<1x8x32xf32>,
    %c0_7 = arith.constant 0 : index
    %c0_8 = arith.constant 0 : index
    %c64 = arith.constant 64 : index
    %3 = vector.load %arg3[%c0_7, %c0_8, %c64] : memref<1x8x128xf32, #tpu.memory_space<vmem>>, vector<1x8x32xf32>
    tpu.vector_store %arg3[%c0_7, %c0_8, %c64], %0 {strides = array<i32>} : memref<1x8x128xf32, #tpu.memory_space<vmem>>, vector<1x8x32xf32>,
    %c0_9 = arith.constant 0 : index
    %c0_10 = arith.constant 0 : index
    %c96 = arith.constant 96 : index
    %4 = vector.load %arg3[%c0_9, %c0_10, %c96] : memref<1x8x128xf32, #tpu.memory_space<vmem>>, vector<1x8x32xf32>
    tpu.vector_store %arg3[%c0_9, %c0_10, %c96], %0 {strides = array<i32>} : memref<1x8x128xf32, #tpu.memory_space<vmem>>, vector<1x8x32xf32>,
    return
  }
  func.func @transform_0(%arg0: i32, %arg1: i32) -> (i32, i32, i32) {
    %c0_i32 = arith.constant 0 : i32
    %c0_i32_0 = arith.constant 0 : i32
    return %arg0, %arg1, %c0_i32 : i32, i32, i32
  }
  func.func @transform_1(%arg0: i32, %arg1: i32) -> (i32, i32, i32) {
    %c0_i32 = arith.constant 0 : i32
    %c0_i32_0 = arith.constant 0 : i32
    return %arg0, %arg1, %c0_i32 : i32, i32, i32
  }
}

</mosaic_0001>

<llo_original>
// kernel: tpu_custom_call.1
$region0: #{tpu_custom_call.1}
  #allocation0 [shape = 'u32[]', space=smem, size = 0x4, offset = 0x4, fixed_abs, tag = 'smem constant byte address 0x4 - core index']
  #allocation1 [shape = 'u32[144,128]{1,0:T(1,128)}', space=vmem, size = 0x12000, scoped, tag = 'internal scratch']
  %s0 = inlined_call_operand.hbm [shape: f32[2,16,32], index: 0, kind: input, shape index: {}]
  %s1 = inlined_call_operand.vmem [shape: f32[2,64,32], index: 1, kind: output, shape index: {}]
  %s2 = sld [smem:[#allocation0]]
  $region41: #{tpu_custom_call.1} parent=0
    _
  %s4 = ssub.s32 1, %s2
  %s5 = scalar_select 0, %s4, %s2
  $region1: #{tpu_custom_call.1} parent=0
    #allocation2 [shape = 'u8[8192]{0}', space=vmem, size = 0x2000, scoped, tag = 'input window, operand 0']
    #allocation3 [shape = 's32[2]{0}', space=sflag, size = 0x8, scoped, tag = 'scoped memory for tpu_custom_call.1']
    %6 = vsyncpa [#allocation3], 0
    %s7 = scalar_lea.sflag [#allocation3], 1
    %8 = vsyncpa %s7, 0
    loop: start=0, step=1, limit=6
    $region2: #{tpu_custom_call.1} parent=1 // loop_pre_header
      _
    $region3: #{tpu_custom_call.1} parent=1 // loop_header
      %s10 = sphi 0, %s14
      %p11 = scmp.ge.s32.totalorder %s10, 6
      %s17 = sphi 0, %s29
      %s18 = sphi 0, %s25
      %s19 = sphi 0, %s17
      %s20 = sphi 0, %s18
      %s21 = sphi 0, %s19
      %s22 = sphi 0, %s20
      %s34 = sphi 0, %s36
      %s37 = sphi 0, %s34
      %s38 = sphi 0, %s37
      %s54 = sphi 0, %s38
      %s62 = sphi 0, %s64
      %s65 = sphi 0, %s62
      %s66 = sphi 0, %s65
      %s82 = sphi 0, %s66
    $region4: #{tpu_custom_call.1} parent=1 // loop_header_branch
      %13 = sbr.rel (%p11) target = $region8
    $region5: #{tpu_custom_call.1} parent=1 // loop_body
      %s15 = ssub.s32 %s10, 1
      %s16 = ssub.s32 %s10, 2
      %s23 = sadd.s32 1, %s18
      %p24 = scmp.ge.s32.totalorder %s23, 2
      %s25 = scalar_select %p24, 0, %s23
      %s26 = sadd.s32 1, %s17
      %s27 = scalar_select %p24, %s26, %s17
      %p28 = scmp.ge.s32.totalorder %s27, 2
      %s29 = scalar_select %p28, 0, %s27
      %s30 = ssub.s32 %s17, %s29
      %s31 = ssub.s32 %s18, %s25
      %s32 = sor.u32 %s30, %s31
      %p33 = scmp.eq.s32.totalorder %s32, 0
      %s35 = sadd.s32 %s34, 1
      %s36 = scalar_select %p33, %s34, %s35
      %p39 = pneg %p33
      %p40 = scmp.eq.s32.totalorder %s10, 3
      %p41 = por %p39, %p40
      %p42 = scmp.ne.s32.totalorder %s34, %s37
      %p43 = scmp.eq.s32.totalorder %s10, 0
      %p44 = por %p42, %p43
      %p45 = scmp.ne.s32.totalorder %s34, %s37
      %p46 = scmp.eq.s32.totalorder %s15, 3
      %p47 = por %p45, %p46
      %p48 = scmp.ne.s32.totalorder %s37, %s38
      %p49 = scmp.eq.s32.totalorder %s15, 0
      %p50 = por %p48, %p49
      %p51 = scmp.ne.s32.totalorder %s37, %s38
      %p52 = scmp.eq.s32.totalorder %s16, 3
      %p53 = por %p51, %p52
      %p55 = scmp.ne.s32.totalorder %s38, %s54
      %p56 = scmp.eq.s32.totalorder %s16, 0
      %p57 = por %p55, %p56
      %s58 = ssub.s32 %s17, %s29
      %s59 = ssub.s32 %s18, %s25
      %s60 = sor.u32 %s58, %s59
      %p61 = scmp.eq.s32.totalorder %s60, 0
      %s63 = sadd.s32 %s62, 1
      %s64 = scalar_select %p61, %s62, %s63
      %p67 = pneg %p61
      %p68 = scmp.eq.s32.totalorder %s10, 3
      %p69 = por %p67, %p68
      %p70 = scmp.ne.s32.totalorder %s62, %s65
      %p71 = scmp.eq.s32.totalorder %s10, 0
      %p72 = por %p70, %p71
      %p73 = scmp.ne.s32.totalorder %s62, %s65
      %p74 = scmp.eq.s32.totalorder %s15, 3
      %p75 = por %p73, %p74
      %p76 = scmp.ne.s32.totalorder %s65, %s66
      %p77 = scmp.eq.s32.totalorder %s15, 0
      %p78 = por %p76, %p77
      %p79 = scmp.ne.s32.totalorder %s65, %s66
      %p80 = scmp.eq.s32.totalorder %s16, 3
      %p81 = por %p79, %p80
      %p83 = scmp.ne.s32.totalorder %s66, %s82
      %p84 = scmp.eq.s32.totalorder %s16, 0
      %p85 = por %p83, %p84
      %p86 = scmp.le.s32.totalorder 1, %s10
      %p87 = scmp.lt.s32.totalorder %s10, 5
      %p88 = pnand %p86, %p87
      %p89 = pneg %p88
      // Predicated region
      $region9: #{tpu_custom_call.1} parent=5 // pred_check
        _
      $region10: #{tpu_custom_call.1} parent=5 // pred_check_branch
        %91 = sbr.rel (%p88) target = $region12
      $region11: #{tpu_custom_call.1} parent=5 // pred_region
        %s92 = ssub.s32 %s10, 1
      $region12: #{tpu_custom_call.1} parent=5 // pred_fallthru
        _
      %p93 = scmp.lt.s32.totalorder %s10, 4
      // Predicated region
      $region13: #{tpu_custom_call.1} parent=5 // pred_check
        %p94 = pneg %p93
      $region14: #{tpu_custom_call.1} parent=5 // pred_check_branch
        %96 = sbr.rel (%p94) target = $region16
      $region15: #{tpu_custom_call.1} parent=5 // pred_region
        // Predicated region
        $region17: #{tpu_custom_call.1} parent=15 // pred_check
          %p97 = pneg %p44
        $region18: #{tpu_custom_call.1} parent=15 // pred_check_branch
          %99 = sbr.rel (%p97) target = $region20
        $region19: #{tpu_custom_call.1} parent=15 // pred_region
          %s100 = sand.u32 %s34, 1
          %s101 = scalar_lea.sflag [#allocation3], %s100
          %s102 = sand.u32 %s34, 1
          %s103 = smul.addr %s102, 8
          %s104 = scalar_lea.vmem [#allocation2], %s103
          %s106 = ssub.s32 128, 128
          %107 = vsyncadd %s101, %s106
          %s108 = smul.addr %s17, 2
          %s109 = sadd.s32 %s18, %s108
          %s110 = smul.addr %s109, 128
          %s111 = scalar_lea.hbm %s0, %s110
          %s113 = sshll.u32 %s104, 4
          %s114 = int_to_ptr.vmem [resolvable:$true] %s113
          %116 = dma.hbm_to_vmem [thread:$0]  %s111, 128, %s114, %s101
        $region20: #{tpu_custom_call.1} parent=15 // pred_fallthru
          _
      $region16: #{tpu_custom_call.1} parent=5 // pred_fallthru
        _
      %p117 = scmp.le.s32.totalorder 1, %s10
      %p118 = scmp.lt.s32.totalorder %s10, 5
      %p119 = pnand %p117, %p118
      %p120 = pneg %p119
      // Predicated region
      $region21: #{tpu_custom_call.1} parent=5 // pred_check
        _
      $region22: #{tpu_custom_call.1} parent=5 // pred_check_branch
        %122 = sbr.rel (%p119) target = $region24
      $region23: #{tpu_custom_call.1} parent=5 // pred_region
        %s123 = ssub.s32 %s10, 1
        %s124 = sand.u32 %s37, 1
        %s125 = scalar_lea.sflag [#allocation3], %s124
        %s126 = sand.u32 %s37, 1
        %s127 = smul.addr %s126, 8
        %s128 = scalar_lea.vmem [#allocation2], %s127
        // Predicated region
        $region25: #{tpu_custom_call.1} parent=23 // pred_check
          %p129 = pneg %p50
        $region26: #{tpu_custom_call.1} parent=23 // pred_check_branch
          %131 = sbr.rel (%p129) target = $region28
        $region27: #{tpu_custom_call.1} parent=23 // pred_region
          %132 = dma.done %s125, 128
        $region28: #{tpu_custom_call.1} parent=23 // pred_fallthru
          _
        %s133 = sand.u32 %s37, 1
        %s134 = scalar_lea.sflag [#allocation3], %s133
        %s135 = sand.u32 %s37, 1
        %s136 = smul.addr %s135, 8
        %s137 = scalar_lea.vmem [#allocation2], %s136
        %p138 = pneg %p50
        %p139 = pneg %p47
        %p140 = pneg %p78
        %p141 = pneg %p75
        %s142 = smul.u32 4, %s20
        %p143 = scmp.lt.s32.totalorder %s19, 1
        %s144 = scalar_select %p143, %s19, 1
        %p145 = scmp.lt.s32.totalorder %s142, 7
        %s146 = scalar_select %p145, %s142, 7
        %s147 = smul.addr %s144, 8
        %s148 = sadd.s32 %s146, %s147
        %s149 = smul.addr %s148, 8
        %s150 = scalar_lea.vmem %s1, %s149
        %s151 = smul.u32 4, %s20
        %p152 = scmp.lt.s32.totalorder %s19, 1
        %s153 = scalar_select %p152, %s19, 1
        %p154 = scmp.lt.s32.totalorder %s151, 7
        %s155 = scalar_select %p154, %s151, 7
        %s156 = smul.addr %s153, 8
        %s157 = sadd.s32 %s155, %s156
        %s158 = smul.addr %s157, 8
        %s159 = scalar_lea.vmem %s1, %s158
        %s160 = smul.u32 4, %s20
        %v161 = vld [vmem:[%s128] sm:$0xff]
        %v163 = vcombine.high %v161, %v161
        %v165 = vunpack.c.l.s4 1966171168
        %v166 = vunpack.c.0.s8 %v165
        %v167 = vlaneseq
        %v168 = vshrl.u32 %v167, 7
        %v169 = vsub.s32 %v166, %v168
        %v170 = vrot.slane %v161, %v169
        %v172 = vunpack.c.l.s4 1966171168
        %v173 = vunpack.c.0.s8 %v172
        %v174 = vlaneseq
        %v175 = vshrl.u32 %v174, 7
        %v176 = vsub.s32 %v173, %v175
        %v177 = vrot.slane %v163, %v176
        %v178 = vcombine.high %v170, %v170
        %v179 = vcombine.high %v177, %v177
        %v181 = vunpack.c.l.s4 1966171168
        %v182 = vunpack.c.0.s8 %v181
        %v183 = vlaneseq
        %v184 = vshrl.u32 %v183, 7
        %v185 = vsub.s32 %v182, %v184
        %v186 = vrot.slane %v170, %v185
        %v188 = vunpack.c.l.s4 1966171168
        %v189 = vunpack.c.0.s8 %v188
        %v190 = vlaneseq
        %v191 = vshrl.u32 %v190, 7
        %v192 = vsub.s32 %v189, %v191
        %v193 = vrot.slane %v177, %v192
        %v195 = vunpack.c.l.s4 1966171168
        %v196 = vunpack.c.0.s8 %v195
        %v197 = vlaneseq
        %v198 = vshrl.u32 %v197, 7
        %v199 = vsub.s32 %v196, %v198
        %v200 = vrot.slane %v178, %v199
        %v202 = vunpack.c.l.s4 1966171168
        %v203 = vunpack.c.0.s8 %v202
        %v204 = vlaneseq
        %v205 = vshrl.u32 %v204, 7
        %v206 = vsub.s32 %v203, %v205
        %v207 = vrot.slane %v179, %v206
        %v208 = vcombine.high %v186, %v186
        %v209 = vcombine.high %v193, %v193
        %v210 = vcombine.high %v200, %v200
        %v211 = vcombine.high %v207, %v207
        %v212 = vlaneseq
        %v213 = vshrl.u32 %v212, 7
        %v214 = vsub.s32 0, %v213
        %v215 = vrot.slane %v186, %v214
        %v216 = vlaneseq
        %v217 = vshrl.u32 %v216, 7
        %v218 = vsub.s32 0, %v217
        %v219 = vrot.slane %v200, %v218
        %v220 = vlaneseq
        %v221 = vshrl.u32 %v220, 7
        %v222 = vsub.s32 0, %v221
        %v223 = vrot.slane %v208, %v222
        %v224 = vlaneseq
        %v225 = vshrl.u32 %v224, 7
        %v226 = vsub.s32 0, %v225
        %v227 = vrot.slane %v210, %v226
        %v228 = vlaneseq
        %v229 = vshrl.u32 %v228, 7
        %v230 = vsub.s32 0, %v229
        %v231 = vrot.slane %v193, %v230
        %v232 = vlaneseq
        %v233 = vshrl.u32 %v232, 7
        %v234 = vsub.s32 0, %v233
        %v235 = vrot.slane %v207, %v234
        %v236 = vlaneseq
        %v237 = vshrl.u32 %v236, 7
        %v238 = vsub.s32 0, %v237
        %v239 = vrot.slane %v209, %v238
        %v240 = vlaneseq
        %v241 = vshrl.u32 %v240, 7
        %v242 = vsub.s32 0, %v241
        %v243 = vrot.slane %v211, %v242
        %v244 = vcombine.low %v215, %v219
        %v245 = vcombine.low %v223, %v227
        %v246 = vcombine.low %v231, %v235
        %v247 = vcombine.low %v239, %v243
        %vm252 = vcmask 261120
        %253 = vst.msk [vmem:[%s159] sm:$0xff] %vm252, %v244
        %254 = vst.msk [vmem:[%s159 + $0x8] sm:$0xff] %vm252, %v245
        %255 = vst.msk [vmem:[%s159 + $0x10] sm:$0xff] %vm252, %v246
        %256 = vst.msk [vmem:[%s159 + $0x18] sm:$0xff] %vm252, %v247
        %s257 = smul.u32 4, %s20
        %p258 = scmp.lt.s32.totalorder %s19, 1
        %s259 = scalar_select %p258, %s19, 1
        %p260 = scmp.lt.s32.totalorder %s257, 7
        %s261 = scalar_select %p260, %s257, 7
        %s262 = smul.addr %s259, 8
        %s263 = sadd.s32 %s261, %s262
        %s264 = smul.addr %s263, 8
        %s265 = scalar_lea.vmem %s1, %s264
        // Predicated region
        $region29: #{tpu_custom_call.1} parent=23 // pred_check
          %p266 = pneg %p75
        $region30: #{tpu_custom_call.1} parent=23 // pred_check_branch
          %268 = sbr.rel (%p266) target = $region32
        $region31: #{tpu_custom_call.1} parent=23 // pred_region
          %s269 = smul.u32 4, %s20
        $region32: #{tpu_custom_call.1} parent=23 // pred_fallthru
          _
      $region24: #{tpu_custom_call.1} parent=5 // pred_fallthru
        _
      %p270 = scmp.le.s32.totalorder 2, %s10
      // Predicated region
      $region33: #{tpu_custom_call.1} parent=5 // pred_check
        %p271 = pneg %p270
      $region34: #{tpu_custom_call.1} parent=5 // pred_check_branch
        %273 = sbr.rel (%p271) target = $region36
      $region35: #{tpu_custom_call.1} parent=5 // pred_region
        %s274 = ssub.s32 %s10, 2
        // Predicated region
        $region37: #{tpu_custom_call.1} parent=35 // pred_check
          %p275 = pneg %p81
        $region38: #{tpu_custom_call.1} parent=35 // pred_check_branch
          %277 = sbr.rel (%p275) target = $region40
        $region39: #{tpu_custom_call.1} parent=35 // pred_region
          %s278 = smul.u32 4, %s22
          %p279 = scmp.lt.s32.totalorder %s21, 1
          %s280 = scalar_select %p279, %s21, 1
          %p281 = scmp.lt.s32.totalorder %s278, 7
          %s282 = scalar_select %p281, %s278, 7
          %s283 = smul.addr %s280, 8
          %s284 = sadd.s32 %s282, %s283
          %s285 = smul.addr %s284, 8
          %s286 = scalar_lea.vmem %s1, %s285
        $region40: #{tpu_custom_call.1} parent=35 // pred_fallthru
          _
      $region36: #{tpu_custom_call.1} parent=5 // pred_fallthru
        _
    $region6: #{tpu_custom_call.1} parent=1 // loop_footer
      %s14 = sadd.s32 1, %s10
    $region7: #{tpu_custom_call.1} parent=1 // loop_footer_branch
      %9 = sbr.rel target = $region3
    $region8: #{tpu_custom_call.1} parent=1 // loop_exit
      _
    %287 = vsyncpa [#allocation3], 1
    %s288 = scalar_lea.sflag [#allocation3], 1
    %289 = vsyncpa %s288, 1

// kernel: tpu_custom_call.1
$region0: #{tpu_custom_call.1}
  #allocation0 [shape = 'u32[]', space=smem, size = 0x4, offset = 0x4, fixed_abs, tag = 'smem constant byte address 0x4 - core index']
  #allocation1 [shape = 'u32[144,128]{1,0:T(1,128)}', space=vmem, size = 0x12000, scoped, tag = 'internal scratch']
  %s0 = inlined_call_operand.hbm [shape: f32[2,16,32], index: 0, kind: input, shape index: {}]
  %s1 = inlined_call_operand.hbm [shape: f32[2,16,128], index: 1, kind: output, shape index: {}]
  %s2 = sld [smem:[#allocation0]]
  $region41: #{tpu_custom_call.1} parent=0
    _
  %s4 = ssub.s32 1, %s2
  %s5 = scalar_select 0, %s4, %s2
  $region1: #{tpu_custom_call.1} parent=0
    #allocation2 [shape = 'u8[8192]{0}', space=vmem, size = 0x2000, scoped, tag = 'input window, operand 0']
    #allocation3 [shape = 's32[2]{0}', space=sflag, size = 0x8, scoped, tag = 'scoped memory for tpu_custom_call.1']
    #allocation4 [shape = 's32[2]{0}', space=sflag, size = 0x8, scoped, tag = 'scoped memory for tpu_custom_call.1']
    #allocation5 [shape = 'u8[8192]{0}', space=vmem, size = 0x2000, scoped, tag = 'output window, operand 0']
    %6 = vsyncpa [#allocation3], 0
    %s7 = scalar_lea.sflag [#allocation3], 1
    %8 = vsyncpa %s7, 0
    %9 = vsyncpa [#allocation4], 0
    %s10 = scalar_lea.sflag [#allocation4], 1
    %11 = vsyncpa %s10, 0
    loop: start=0, step=1, limit=6
    $region2: #{tpu_custom_call.1} parent=1 // loop_pre_header
      _
    $region3: #{tpu_custom_call.1} parent=1 // loop_header
      %s13 = sphi 0, %s17
      %p14 = scmp.ge.s32.totalorder %s13, 6
      %s20 = sphi 0, %s32
      %s21 = sphi 0, %s28
      %s22 = sphi 0, %s20
      %s23 = sphi 0, %s21
      %s24 = sphi 0, %s22
      %s25 = sphi 0, %s23
      %s37 = sphi 0, %s39
      %s40 = sphi 0, %s37
      %s41 = sphi 0, %s40
      %s57 = sphi 0, %s41
      %s65 = sphi 0, %s67
      %s68 = sphi 0, %s65
      %s69 = sphi 0, %s68
      %s85 = sphi 0, %s69
    $region4: #{tpu_custom_call.1} parent=1 // loop_header_branch
      %16 = sbr.rel (%p14) target = $region8
    $region5: #{tpu_custom_call.1} parent=1 // loop_body
      %s18 = ssub.s32 %s13, 1
      %s19 = ssub.s32 %s13, 2
      %s26 = sadd.s32 1, %s21
      %p27 = scmp.ge.s32.totalorder %s26, 2
      %s28 = scalar_select %p27, 0, %s26
      %s29 = sadd.s32 1, %s20
      %s30 = scalar_select %p27, %s29, %s20
      %p31 = scmp.ge.s32.totalorder %s30, 2
      %s32 = scalar_select %p31, 0, %s30
      %s33 = ssub.s32 %s20, %s32
      %s34 = ssub.s32 %s21, %s28
      %s35 = sor.u32 %s33, %s34
      %p36 = scmp.eq.s32.totalorder %s35, 0
      %s38 = sadd.s32 %s37, 1
      %s39 = scalar_select %p36, %s37, %s38
      %p42 = pneg %p36
      %p43 = scmp.eq.s32.totalorder %s13, 3
      %p44 = por %p42, %p43
      %p45 = scmp.ne.s32.totalorder %s37, %s40
      %p46 = scmp.eq.s32.totalorder %s13, 0
      %p47 = por %p45, %p46
      %p48 = scmp.ne.s32.totalorder %s37, %s40
      %p49 = scmp.eq.s32.totalorder %s18, 3
      %p50 = por %p48, %p49
      %p51 = scmp.ne.s32.totalorder %s40, %s41
      %p52 = scmp.eq.s32.totalorder %s18, 0
      %p53 = por %p51, %p52
      %p54 = scmp.ne.s32.totalorder %s40, %s41
      %p55 = scmp.eq.s32.totalorder %s19, 3
      %p56 = por %p54, %p55
      %p58 = scmp.ne.s32.totalorder %s41, %s57
      %p59 = scmp.eq.s32.totalorder %s19, 0
      %p60 = por %p58, %p59
      %s61 = ssub.s32 %s20, %s32
      %s62 = ssub.s32 %s21, %s28
      %s63 = sor.u32 %s61, %s62
      %p64 = scmp.eq.s32.totalorder %s63, 0
      %s66 = sadd.s32 %s65, 1
      %s67 = scalar_select %p64, %s65, %s66
      %p70 = pneg %p64
      %p71 = scmp.eq.s32.totalorder %s13, 3
      %p72 = por %p70, %p71
      %p73 = scmp.ne.s32.totalorder %s65, %s68
      %p74 = scmp.eq.s32.totalorder %s13, 0
      %p75 = por %p73, %p74
      %p76 = scmp.ne.s32.totalorder %s65, %s68
      %p77 = scmp.eq.s32.totalorder %s18, 3
      %p78 = por %p76, %p77
      %p79 = scmp.ne.s32.totalorder %s68, %s69
      %p80 = scmp.eq.s32.totalorder %s18, 0
      %p81 = por %p79, %p80
      %p82 = scmp.ne.s32.totalorder %s68, %s69
      %p83 = scmp.eq.s32.totalorder %s19, 3
      %p84 = por %p82, %p83
      %p86 = scmp.ne.s32.totalorder %s69, %s85
      %p87 = scmp.eq.s32.totalorder %s19, 0
      %p88 = por %p86, %p87
      %p89 = scmp.le.s32.totalorder 1, %s13
      %p90 = scmp.lt.s32.totalorder %s13, 5
      %p91 = pnand %p89, %p90
      %p92 = pneg %p91
      // Predicated region
      $region9: #{tpu_custom_call.1} parent=5 // pred_check
        _
      $region10: #{tpu_custom_call.1} parent=5 // pred_check_branch
        %94 = sbr.rel (%p91) target = $region12
      $region11: #{tpu_custom_call.1} parent=5 // pred_region
        %s95 = ssub.s32 %s13, 1
      $region12: #{tpu_custom_call.1} parent=5 // pred_fallthru
        _
      %p96 = scmp.lt.s32.totalorder %s13, 4
      // Predicated region
      $region13: #{tpu_custom_call.1} parent=5 // pred_check
        %p97 = pneg %p96
      $region14: #{tpu_custom_call.1} parent=5 // pred_check_branch
        %99 = sbr.rel (%p97) target = $region16
      $region15: #{tpu_custom_call.1} parent=5 // pred_region
        // Predicated region
        $region17: #{tpu_custom_call.1} parent=15 // pred_check
          %p100 = pneg %p47
        $region18: #{tpu_custom_call.1} parent=15 // pred_check_branch
          %102 = sbr.rel (%p100) target = $region20
        $region19: #{tpu_custom_call.1} parent=15 // pred_region
          %s103 = sand.u32 %s37, 1
          %s104 = scalar_lea.sflag [#allocation3], %s103
          %s105 = sand.u32 %s37, 1
          %s106 = smul.addr %s105, 8
          %s107 = scalar_lea.vmem [#allocation2], %s106
          %s109 = ssub.s32 128, 128
          %110 = vsyncadd %s104, %s109
          %s111 = smul.addr %s20, 2
          %s112 = sadd.s32 %s21, %s111
          %s113 = smul.addr %s112, 128
          %s114 = scalar_lea.hbm %s0, %s113
          %s116 = sshll.u32 %s107, 4
          %s117 = int_to_ptr.vmem [resolvable:$true] %s116
          %119 = dma.hbm_to_vmem [thread:$0]  %s114, 128, %s117, %s104
        $region20: #{tpu_custom_call.1} parent=15 // pred_fallthru
          _
      $region16: #{tpu_custom_call.1} parent=5 // pred_fallthru
        _
      %p120 = scmp.le.s32.totalorder 1, %s13
      %p121 = scmp.lt.s32.totalorder %s13, 5
      %p122 = pnand %p120, %p121
      %p123 = pneg %p122
      // Predicated region
      $region21: #{tpu_custom_call.1} parent=5 // pred_check
        _
      $region22: #{tpu_custom_call.1} parent=5 // pred_check_branch
        %125 = sbr.rel (%p122) target = $region24
      $region23: #{tpu_custom_call.1} parent=5 // pred_region
        %s126 = ssub.s32 %s13, 1
        %s127 = sand.u32 %s40, 1
        %s128 = scalar_lea.sflag [#allocation3], %s127
        %s129 = sand.u32 %s40, 1
        %s130 = smul.addr %s129, 8
        %s131 = scalar_lea.vmem [#allocation2], %s130
        // Predicated region
        $region25: #{tpu_custom_call.1} parent=23 // pred_check
          %p132 = pneg %p53
        $region26: #{tpu_custom_call.1} parent=23 // pred_check_branch
          %134 = sbr.rel (%p132) target = $region28
        $region27: #{tpu_custom_call.1} parent=23 // pred_region
          %135 = dma.done %s128, 128
        $region28: #{tpu_custom_call.1} parent=23 // pred_fallthru
          _
        %s136 = sand.u32 %s40, 1
        %s137 = scalar_lea.sflag [#allocation3], %s136
        %s138 = sand.u32 %s40, 1
        %s139 = smul.addr %s138, 8
        %s140 = scalar_lea.vmem [#allocation2], %s139
        %p141 = pneg %p53
        %p142 = pneg %p50
        %p143 = pneg %p81
        %p144 = pneg %p78
        %s145 = sand.u32 %s68, 1
        %s146 = scalar_lea.sflag [#allocation4], %s145
        %s147 = sand.u32 %s68, 1
        %s148 = smul.addr %s147, 8
        %s149 = scalar_lea.vmem [#allocation5], %s148
        %v150 = vld [vmem:[%s131] sm:$0xff]
        %vm151 = vcmask 261120
        %152 = vst.msk [vmem:[%s149] sm:$0xff] %vm151, %v150
        %154 = vrot.lane.b32.xlu0 %v150, 32
        %v155 = vpop.permute.xlu0 %154
        %vm157 = vcmask 523520
        %158 = vst.msk [vmem:[%s149] sm:$0xff] %vm157, %v155
        %159 = vrot.lane.b32.xlu0 %v150, 64
        %v160 = vpop.permute.xlu0 %159
        %vm162 = vcmask 785920
        %163 = vst.msk [vmem:[%s149] sm:$0xff] %vm162, %v160
        %164 = vrot.lane.b32.xlu0 %v150, 96
        %v165 = vpop.permute.xlu0 %164
        %vm167 = vcmask 1048320
        %168 = vst.msk [vmem:[%s149] sm:$0xff] %vm167, %v165
        %s169 = sand.u32 %s68, 1
        %s170 = scalar_lea.sflag [#allocation4], %s169
        %s171 = sand.u32 %s68, 1
        %s172 = smul.addr %s171, 8
        %s173 = scalar_lea.vmem [#allocation5], %s172
        // Predicated region
        $region29: #{tpu_custom_call.1} parent=23 // pred_check
          %p174 = pneg %p78
        $region30: #{tpu_custom_call.1} parent=23 // pred_check_branch
          %176 = sbr.rel (%p174) target = $region32
        $region31: #{tpu_custom_call.1} parent=23 // pred_region
          %s178 = ssub.s32 128, 128
          %179 = vsyncadd %s170, %s178
          %s180 = smul.addr %s22, 2
          %s181 = sadd.s32 %s23, %s180
          %s182 = smul.addr %s181, 128
          %s183 = scalar_lea.hbm %s1, %s182
          %s185 = sshll.u32 %s173, 4
          %s186 = int_to_ptr.vmem [resolvable:$true] %s185
          %188 = dma.vmem_to_hbm [thread:$0]  %s186, 128, %s183, %s170
        $region32: #{tpu_custom_call.1} parent=23 // pred_fallthru
          _
      $region24: #{tpu_custom_call.1} parent=5 // pred_fallthru
        _
      %p189 = scmp.le.s32.totalorder 2, %s13
      // Predicated region
      $region33: #{tpu_custom_call.1} parent=5 // pred_check
        %p190 = pneg %p189
      $region34: #{tpu_custom_call.1} parent=5 // pred_check_branch
        %192 = sbr.rel (%p190) target = $region36
      $region35: #{tpu_custom_call.1} parent=5 // pred_region
        %s193 = ssub.s32 %s13, 2
        // Predicated region
        $region37: #{tpu_custom_call.1} parent=35 // pred_check
          %p194 = pneg %p84
        $region38: #{tpu_custom_call.1} parent=35 // pred_check_branch
          %196 = sbr.rel (%p194) target = $region40
        $region39: #{tpu_custom_call.1} parent=35 // pred_region
          %s197 = sand.u32 %s69, 1
          %s198 = scalar_lea.sflag [#allocation4], %s197
          %s199 = sand.u32 %s69, 1
          %s200 = smul.addr %s199, 8
          %s201 = scalar_lea.vmem [#allocation5], %s200
          %202 = dma.done %s198, 128
        $region40: #{tpu_custom_call.1} parent=35 // pred_fallthru
          _
      $region36: #{tpu_custom_call.1} parent=5 // pred_fallthru
        _
    $region6: #{tpu_custom_call.1} parent=1 // loop_footer
      %s17 = sadd.s32 1, %s13
    $region7: #{tpu_custom_call.1} parent=1 // loop_footer_branch
      %12 = sbr.rel target = $region3
    $region8: #{tpu_custom_call.1} parent=1 // loop_exit
      _
    %203 = vsyncpa [#allocation3], 1
    %s204 = scalar_lea.sflag [#allocation3], 1
    %205 = vsyncpa %s204, 1
    %206 = vsyncpa [#allocation4], 1
    %s207 = scalar_lea.sflag [#allocation4], 1
    %208 = vsyncpa %s207, 1

</llo_original>
